<compile_context>
chip_gen: v6e
topology: v6e:2x2x1
jax: 0.10.0
libtpu: 0.0.40
codegen_flags: <defaults>
</compile_context>

<pallas_src>
import functools

import jax
import jax.numpy as jnp
from jax.experimental import pallas as pl
from jax.experimental.pallas import tpu as pltpu

LANE = 128
SUBLANE = 8
NEG_INF = -1e30


def _round_up(v, m):
    return ((v + m - 1) // m) * m


# --------------------------------------------------------------------------- #
# Kernel: one graph-batch (N nodes, G graphs) per grid step.                   #
# --------------------------------------------------------------------------- #
def gcn_kernel(x_ref, a_ref, maskb_ref,
               wc1_ref, bc1_ref, wc2_ref, bc2_ref,
               wf1_ref, bf1_ref, wf2_ref, bf2_ref,
               out_ref):
    x = x_ref[0]            # (N, Fp)  bf16 node features (zero-padded lanes)
    a = a_ref[0]            # (N, N)   bf16 normalized adjacency (with self loops)
    wf1 = wf1_ref[...]      # (Hp, Hp) bf16 shared fc1 weight (used 3x)
    bf1 = bf1_ref[...]      # (1, Hp)  f32

    def mm(lhs, rhs):
        # bf16 into the MXU, f32 accumulation.
        return jnp.dot(lhs.astype(jnp.bfloat16), rhs,
                       preferred_element_type=jnp.float32)

    # conv1: A_hat @ (X W1) + b1, ReLU        (bias / ReLU kept in f32)
    h = mm(x, wc1_ref[...])
    h = mm(a, h) + bc1_ref[...]
    h = jnp.maximum(h, 0.0)

    # fc1 + ReLU
    h = mm(h, wf1) + bf1
    h = jnp.maximum(h, 0.0)
    # TODO(synk): dropout implemented as identity (eval-mode semantics).

    # fc1 again (no activation before conv2, matching the reference forward)
    h = mm(h, wf1) + bf1

    # conv2: A_hat @ (H W2) + b2, ReLU
    h = mm(h, wc2_ref[...])
    h = mm(a, h) + bc2_ref[...]
    h = jnp.maximum(h, 0.0)

    # global_max_pool(x, batch): single masked max over the node axis.
    # maskb is an additive bias: 0 for (graph g, node n) members, -1e30 otherwise.
    mb = maskb_ref[0]                                   # (G, N, 1) f32
    pooled = jnp.max(h[None, :, :] + mb, axis=1)        # (G, Hp)   f32

    # fc1 + ReLU
    p = mm(pooled, wf1) + bf1
    p = jnp.maximum(p, 0.0)
    # TODO(synk): dropout implemented as identity (eval-mode semantics).

    # fc2 -> lane-dense (G, Op) output slab (sliced to out_channels in the wrapper)
    out_ref[0] = mm(p, wf2_ref[...]) + bf2_ref[...]


# --------------------------------------------------------------------------- #
# Wrapper / glue                                                               #
# --------------------------------------------------------------------------- #
def normalized_adjacency(edge_index, num_nodes, n_pad):
    """Dense D^-1/2 (A + I) D^-1/2, zero-padded to (n_pad, n_pad). f32."""
    src, dst = edge_index[0], edge_index[1]
    A = jnp.zeros((n_pad, n_pad), jnp.float32).at[dst, src].add(1.0)
    self_loops = (jnp.arange(n_pad) < num_nodes).astype(jnp.float32)
    A = A + jnp.diag(self_loops)               # self-loops only for real nodes
    deg = jnp.sum(A, axis=1)
    dinv = jnp.where(deg > 0, 1.0 / jnp.sqrt(deg), 0.0)
    return dinv[:, None] * A * dinv[None, :]


def pool_mask_bias(batch, num_graphs, n_pad):
    """(G, n_pad, 1) additive pooling bias: 0 for members, -1e30 otherwise."""
    n = batch.shape[0]
    node_graph = jnp.full((n_pad,), -1, jnp.int32).at[:n].set(batch)
    member = node_graph[None, :] == jnp.arange(num_graphs, dtype=jnp.int32)[:, None]
    return jnp.where(member, 0.0, NEG_INF).astype(jnp.float32)[:, :, None]


def pad_features(x, n_pad, f_pad):
    out = jnp.zeros((n_pad, f_pad), jnp.float32)
    return out.at[:x.shape[0], :x.shape[1]].set(x).astype(jnp.bfloat16)


def init_params(key, atom_feature_dim, hidden_channels, out_channels):
    ks = jax.random.split(key, 8)
    s = 0.1
    return {
        "wc1": s * jax.random.normal(ks[0], (atom_feature_dim, hidden_channels), jnp.float32),
        "bc1": s * jax.random.normal(ks[1], (1, hidden_channels), jnp.float32),
        "wc2": s * jax.random.normal(ks[2], (hidden_channels, hidden_channels), jnp.float32),
        "bc2": s * jax.random.normal(ks[3], (1, hidden_channels), jnp.float32),
        "wf1": s * jax.random.normal(ks[4], (hidden_channels, hidden_channels), jnp.float32),
        "bf1": s * jax.random.normal(ks[5], (1, hidden_channels), jnp.float32),
        "wf2": s * jax.random.normal(ks[6], (hidden_channels, out_channels), jnp.float32),
        "bf2": s * jax.random.normal(ks[7], (1, out_channels), jnp.float32),
    }


def pad_params(params, f_pad, h_pad, o_pad):
    """Zero-pad every lane dim to a multiple of 128; weights cast to bf16."""
    def pad2(w, rows, cols):
        z = jnp.zeros((rows, cols), jnp.float32)
        return z.at[:w.shape[0], :w.shape[1]].set(w)

    return {
        "wc1": pad2(params["wc1"], f_pad, h_pad).astype(jnp.bfloat16),
        "bc1": pad2(params["bc1"], 1, h_pad),
        "wc2": pad2(params["wc2"], h_pad, h_pad).astype(jnp.bfloat16),
        "bc2": pad2(params["bc2"], 1, h_pad),
        "wf1": pad2(params["wf1"], h_pad, h_pad).astype(jnp.bfloat16),
        "bf1": pad2(params["bf1"], 1, h_pad),
        "wf2": pad2(params["wf2"], h_pad, o_pad).astype(jnp.bfloat16),
        "bf2": pad2(params["bf2"], 1, o_pad),
    }


@functools.partial(jax.jit, static_argnames=("out_channels",))
def gcn_forward(x_b, a_b, maskb_b, dev_params, *, out_channels):
    """x_b: (B, Np, Fp) bf16; a_b: (B, Np, Np) bf16; maskb_b: (B, G, Np, 1) f32."""
    B, n_pad, f_pad = x_b.shape
    G = maskb_b.shape[1]
    h_pad = dev_params["wc1"].shape[1]
    o_pad = dev_params["wf2"].shape[1]

    def shared(shape):  # weight/bias blocks reused by every grid step (no re-DMA)
        return pl.BlockSpec(shape, lambda b: (0,) * len(shape))

    out = pl.pallas_call(
        gcn_kernel,
        out_shape=jax.ShapeDtypeStruct((B, G, o_pad), jnp.float32),
        grid=(B,),
        in_specs=[
            pl.BlockSpec((1, n_pad, f_pad), lambda b: (b, 0, 0)),
            pl.BlockSpec((1, n_pad, n_pad), lambda b: (b, 0, 0)),
            pl.BlockSpec((1, G, n_pad, 1), lambda b: (b, 0, 0, 0)),
            shared((f_pad, h_pad)), shared((1, h_pad)),
            shared((h_pad, h_pad)), shared((1, h_pad)),
            shared((h_pad, h_pad)), shared((1, h_pad)),
            shared((h_pad, o_pad)), shared((1, o_pad)),
        ],
        out_specs=pl.BlockSpec((1, G, o_pad), lambda b: (b, 0, 0)),
        compiler_params=pltpu.CompilerParams(
            dimension_semantics=("parallel",)),
    )(x_b, a_b, maskb_b,
      dev_params["wc1"], dev_params["bc1"],
      dev_params["wc2"], dev_params["bc2"],
      dev_params["wf1"], dev_params["bf1"],
      dev_params["wf2"], dev_params["bf2"])
    # slice the lane-dense slab back to the logical output width
    return out[:, :, :out_channels]


def gcn_reference(x, a_hat, batch, params, num_graphs):
    """Pure-JAX f32 reference of the original forward pass (one graph-batch)."""
    h = x @ params["wc1"]
    h = a_hat @ h + params["bc1"]
    h = jnp.maximum(h, 0.0)
    h = h @ params["wf1"] + params["bf1"]
    h = jnp.maximum(h, 0.0)
    h = h @ params["wf1"] + params["bf1"]
    h = h @ params["wc2"]
    h = a_hat @ h + params["bc2"]
    h = jnp.maximum(h, 0.0)
    member = batch[None, :] == jnp.arange(num_graphs, dtype=jnp.int32)[:, None]
    pooled = jnp.max(jnp.where(member[:, :, None], h[None], NEG_INF), axis=1)
    p = pooled @ params["wf1"] + params["bf1"]
    p = jnp.maximum(p, 0.0)
    return p @ params["wf2"] + params["bf2"]


if __name__ == "__main__":
    atom_feature_dim = 8
    hidden_channels = 32
    out_channels = 8
    num_graphs = 2          # graphs per graph-batch
    nodes_per_graph = 8
    n = num_graphs * nodes_per_graph       # 16 nodes per graph-batch
    num_batches = 4                        # grid: 4 independent graph-batches per call

    f_pad = _round_up(atom_feature_dim, LANE)   # 128
    h_pad = _round_up(hidden_channels, LANE)    # 128
    o_pad = _round_up(out_channels, LANE)       # 128
    n_pad = _round_up(n, SUBLANE)               # 16

    key = jax.random.PRNGKey(0)
    k_x, k_p = jax.random.split(key)

    # Undirected chain graph inside each of the graphs (same topology per batch item).
    src_list, dst_list = [], []
    for g in range(num_graphs):
        base = g * nodes_per_graph
        for i in range(nodes_per_graph - 1):
            u, v = base + i, base + i + 1
            src_list += [u, v]
            dst_list += [v, u]
    edge_index = jnp.array([src_list, dst_list], dtype=jnp.int32)       # (2, 28)
    batch = jnp.repeat(jnp.arange(num_graphs, dtype=jnp.int32), nodes_per_graph)

    xs = jax.random.normal(k_x, (num_batches, n, atom_feature_dim), jnp.float32)

    params = init_params(k_p, atom_feature_dim, hidden_channels, out_channels)
    dev_params = pad_params(params, f_pad, h_pad, o_pad)

    a_hat_f32 = normalized_adjacency(edge_index, n, n_pad)              # (Np, Np) f32
    maskb = pool_mask_bias(batch, num_graphs, n_pad)                    # (G, Np, 1)

    x_b = jnp.stack([pad_features(xs[b], n_pad, f_pad) for b in range(num_batches)])
    a_b = jnp.broadcast_to(a_hat_f32.astype(jnp.bfloat16),
                           (num_batches, n_pad, n_pad))
    maskb_b = jnp.broadcast_to(maskb, (num_batches,) + maskb.shape)

    out = gcn_forward(x_b, a_b, maskb_b, dev_params, out_channels=out_channels)
    out = jax.block_until_ready(out)
    assert out.shape == (num_batches, num_graphs, out_channels)
    assert bool(jnp.all(jnp.isfinite(out)))

    # bf16-MXU kernel vs f32 pure-JAX reference (loose tolerance for bf16 rounding).
    ref0 = gcn_reference(xs[0], a_hat_f32[:n, :n], batch, params, num_graphs)
    err = float(jnp.max(jnp.abs(out[0] - ref0)))
    assert err < 0.1, f"max abs err {err}"

    print("KERNEL_OK")
</pallas_src>

<mosaic_0001>
module attributes {stable_mosaic.version = 11 : i64} {
  func.func @gcn_kernel(%arg0: i32, %arg1: memref<1x16x128xbf16, #tpu.memory_space<vmem>>, %arg2: memref<1x16x16xbf16, #tpu.memory_space<vmem>>, %arg3: memref<1x2x16x1xf32, #tpu.memory_space<vmem>>, %arg4: memref<128x128xbf16, #tpu.memory_space<vmem>>, %arg5: memref<1x128xf32, #tpu.memory_space<vmem>>, %arg6: memref<128x128xbf16, #tpu.memory_space<vmem>>, %arg7: memref<1x128xf32, #tpu.memory_space<vmem>>, %arg8: memref<128x128xbf16, #tpu.memory_space<vmem>>, %arg9: memref<1x128xf32, #tpu.memory_space<vmem>>, %arg10: memref<128x128xbf16, #tpu.memory_space<vmem>>, %arg11: memref<1x128xf32, #tpu.memory_space<vmem>>, %arg12: memref<1x2x128xf32, #tpu.memory_space<vmem>>) attributes {dimension_semantics = [#tpu.dimension_semantics<parallel>], iteration_bounds = array<i64: 4>, scalar_prefetch = 0 : i64, scratch_operands = 0 : i64, tpu.core_type = #tpu.core_type<tc>, window_params = [{transform_indices = @transform_0, window_bounds = array<i64: 1, 16, 128>}, {transform_indices = @transform_1, window_bounds = array<i64: 1, 16, 16>}, {transform_indices = @transform_2, window_bounds = array<i64: 1, 2, 16, 1>}, {pipeline_mode = #tpu.pipeline_mode<synchronous>, transform_indices = @transform_3, window_bounds = array<i64: 128, 128>}, {pipeline_mode = #tpu.pipeline_mode<synchronous>, transform_indices = @transform_4, window_bounds = array<i64: 1, 128>}, {pipeline_mode = #tpu.pipeline_mode<synchronous>, transform_indices = @transform_5, window_bounds = array<i64: 128, 128>}, {pipeline_mode = #tpu.pipeline_mode<synchronous>, transform_indices = @transform_6, window_bounds = array<i64: 1, 128>}, {pipeline_mode = #tpu.pipeline_mode<synchronous>, transform_indices = @transform_7, window_bounds = array<i64: 128, 128>}, {pipeline_mode = #tpu.pipeline_mode<synchronous>, transform_indices = @transform_8, window_bounds = array<i64: 1, 128>}, {pipeline_mode = #tpu.pipeline_mode<synchronous>, transform_indices = @transform_9, window_bounds = array<i64: 128, 128>}, {pipeline_mode = #tpu.pipeline_mode<synchronous>, transform_indices = @transform_10, window_bounds = array<i64: 1, 128>}, {transform_indices = @transform_11, window_bounds = array<i64: 1, 2, 128>}]} {
    %c0 = arith.constant 0 : index
    %c0_0 = arith.constant 0 : index
    %c0_1 = arith.constant 0 : index
    %0 = vector.load %arg1[%c0, %c0_0, %c0_1] : memref<1x16x128xbf16, #tpu.memory_space<vmem>>, vector<1x16x128xbf16>
    %1 = vector.shape_cast %0 : vector<1x16x128xbf16> to vector<16x128xbf16>
    %c0_2 = arith.constant 0 : index
    %c0_3 = arith.constant 0 : index
    %c0_4 = arith.constant 0 : index
    %2 = vector.load %arg2[%c0_2, %c0_3, %c0_4] : memref<1x16x16xbf16, #tpu.memory_space<vmem>>, vector<1x16x16xbf16>
    %3 = vector.shape_cast %2 : vector<1x16x16xbf16> to vector<16x16xbf16>
    %c0_5 = arith.constant 0 : index
    %c0_6 = arith.constant 0 : index
    %4 = vector.load %arg8[%c0_5, %c0_6] : memref<128x128xbf16, #tpu.memory_space<vmem>>, vector<128x128xbf16>
    %c0_7 = arith.constant 0 : index
    %c0_8 = arith.constant 0 : index
    %5 = vector.load %arg9[%c0_7, %c0_8] : memref<1x128xf32, #tpu.memory_space<vmem>>, vector<1x128xf32>
    %c0_9 = arith.constant 0 : index
    %c0_10 = arith.constant 0 : index
    %6 = vector.load %arg4[%c0_9, %c0_10] : memref<128x128xbf16, #tpu.memory_space<vmem>>, vector<128x128xbf16>
    %cst = arith.constant dense<0.000000e+00> : vector<16x128xf32>
    %7 = tpu.matmul %1, %6, %cst {dimension_numbers = #tpu.dot_dimension_numbers<[1], [0], [0], [1], [0, 0, 1, 1], [], []>} : vector<16x128xbf16>, vector<128x128xbf16>, vector<16x128xf32> -> vector<16x128xf32>
    %cst_11 = arith.constant dense<0.000000e+00> : vector<16x128xf32>
    %8 = tpu.matmul %3, %7, %cst_11 {dimension_numbers = #tpu.dot_dimension_numbers<[1], [0], [0], [1], [0, 0, 1, 1], [], []>} : vector<16x16xbf16>, vector<16x128xf32>, vector<16x128xf32> -> vector<16x128xf32>
    %c0_12 = arith.constant 0 : index
    %c0_13 = arith.constant 0 : index
    %9 = vector.load %arg5[%c0_12, %c0_13] : memref<1x128xf32, #tpu.memory_space<vmem>>, vector<1x128xf32>
    %10 = vector.broadcast %9 : vector<1x128xf32> to vector<16x128xf32>
    %11 = arith.addf %8, %10 : vector<16x128xf32>
    %cst_14 = arith.constant 0.000000e+00 : f32
    %12 = vector.broadcast %cst_14 : f32 to vector<16x128xf32>
    %13 = arith.maximumf %11, %12 : vector<16x128xf32>
    %14 = arith.truncf %13 : vector<16x128xf32> to vector<16x128xbf16>
    %cst_15 = arith.constant dense<0.000000e+00> : vector<16x128xf32>
    %15 = tpu.matmul %14, %4, %cst_15 {dimension_numbers = #tpu.dot_dimension_numbers<[1], [0], [0], [1], [0, 0, 1, 1], [], []>} : vector<16x128xbf16>, vector<128x128xbf16>, vector<16x128xf32> -> vector<16x128xf32>
    %16 = vector.broadcast %5 : vector<1x128xf32> to vector<16x128xf32>
    %17 = arith.addf %15, %16 : vector<16x128xf32>
    %cst_16 = arith.constant 0.000000e+00 : f32
    %18 = vector.broadcast %cst_16 : f32 to vector<16x128xf32>
    %19 = arith.maximumf %17, %18 : vector<16x128xf32>
    %20 = arith.truncf %19 : vector<16x128xf32> to vector<16x128xbf16>
    %cst_17 = arith.constant dense<0.000000e+00> : vector<16x128xf32>
    %21 = tpu.matmul %20, %4, %cst_17 {dimension_numbers = #tpu.dot_dimension_numbers<[1], [0], [0], [1], [0, 0, 1, 1], [], []>} : vector<16x128xbf16>, vector<128x128xbf16>, vector<16x128xf32> -> vector<16x128xf32>
    %22 = vector.broadcast %5 : vector<1x128xf32> to vector<16x128xf32>
    %23 = arith.addf %21, %22 : vector<16x128xf32>
    %c0_18 = arith.constant 0 : index
    %c0_19 = arith.constant 0 : index
    %24 = vector.load %arg6[%c0_18, %c0_19] : memref<128x128xbf16, #tpu.memory_space<vmem>>, vector<128x128xbf16>
    %25 = arith.truncf %23 : vector<16x128xf32> to vector<16x128xbf16>
    %cst_20 = arith.constant dense<0.000000e+00> : vector<16x128xf32>
    %26 = tpu.matmul %25, %24, %cst_20 {dimension_numbers = #tpu.dot_dimension_numbers<[1], [0], [0], [1], [0, 0, 1, 1], [], []>} : vector<16x128xbf16>, vector<128x128xbf16>, vector<16x128xf32> -> vector<16x128xf32>
    %cst_21 = arith.constant dense<0.000000e+00> : vector<16x128xf32>
    %27 = tpu.matmul %3, %26, %cst_21 {dimension_numbers = #tpu.dot_dimension_numbers<[1], [0], [0], [1], [0, 0, 1, 1], [], []>} : vector<16x16xbf16>, vector<16x128xf32>, vector<16x128xf32> -> vector<16x128xf32>
    %c0_22 = arith.constant 0 : index
    %c0_23 = arith.constant 0 : index
    %28 = vector.load %arg7[%c0_22, %c0_23] : memref<1x128xf32, #tpu.memory_space<vmem>>, vector<1x128xf32>
    %29 = vector.broadcast %28 : vector<1x128xf32> to vector<16x128xf32>
    %30 = arith.addf %27, %29 : vector<16x128xf32>
    %cst_24 = arith.constant 0.000000e+00 : f32
    %31 = vector.broadcast %cst_24 : f32 to vector<16x128xf32>
    %32 = arith.maximumf %30, %31 : vector<16x128xf32>
    %c0_25 = arith.constant 0 : index
    %c0_26 = arith.constant 0 : index
    %c0_27 = arith.constant 0 : index
    %c0_28 = arith.constant 0 : index
    %33 = vector.load %arg3[%c0_25, %c0_26, %c0_27, %c0_28] : memref<1x2x16x1xf32, #tpu.memory_space<vmem>>, vector<1x2x16x1xf32>
    %34 = vector.shape_cast %33 : vector<1x2x16x1xf32> to vector<2x16x1xf32>
    %35 = vector.shape_cast %32 : vector<16x128xf32> to vector<1x16x128xf32>
    %36 = vector.broadcast %35 : vector<1x16x128xf32> to vector<2x16x128xf32>
    %37 = vector.broadcast %34 : vector<2x16x1xf32> to vector<2x16x128xf32>
    %38 = arith.addf %36, %37 : vector<2x16x128xf32>
    %cst_29 = arith.constant dense<0xFF800000> : vector<2x128xf32>
    %39 = vector.multi_reduction <maximumf>, %38, %cst_29 [1] : vector<2x16x128xf32> to vector<2x128xf32>
    %40 = arith.truncf %39 : vector<2x128xf32> to vector<2x128xbf16>
    %cst_30 = arith.constant dense<0.000000e+00> : vector<2x128xf32>
    %41 = tpu.matmul %40, %4, %cst_30 {dimension_numbers = #tpu.dot_dimension_numbers<[1], [0], [0], [1], [0, 0, 1, 1], [], []>} : vector<2x128xbf16>, vector<128x128xbf16>, vector<2x128xf32> -> vector<2x128xf32>
    %42 = vector.broadcast %5 : vector<1x128xf32> to vector<2x128xf32>
    %43 = arith.addf %41, %42 : vector<2x128xf32>
    %cst_31 = arith.constant 0.000000e+00 : f32
    %44 = vector.broadcast %cst_31 : f32 to vector<2x128xf32>
    %45 = arith.maximumf %43, %44 : vector<2x128xf32>
    %c0_32 = arith.constant 0 : index
    %c0_33 = arith.constant 0 : index
    %46 = vector.load %arg10[%c0_32, %c0_33] : memref<128x128xbf16, #tpu.memory_space<vmem>>, vector<128x128xbf16>
    %47 = arith.truncf %45 : vector<2x128xf32> to vector<2x128xbf16>
    %cst_34 = arith.constant dense<0.000000e+00> : vector<2x128xf32>
    %48 = tpu.matmul %47, %46, %cst_34 {dimension_numbers = #tpu.dot_dimension_numbers<[1], [0], [0], [1], [0, 0, 1, 1], [], []>} : vector<2x128xbf16>, vector<128x128xbf16>, vector<2x128xf32> -> vector<2x128xf32>
    %c0_35 = arith.constant 0 : index
    %c0_36 = arith.constant 0 : index
    %49 = vector.load %arg11[%c0_35, %c0_36] : memref<1x128xf32, #tpu.memory_space<vmem>>, vector<1x128xf32>
    %50 = vector.broadcast %49 : vector<1x128xf32> to vector<2x128xf32>
    %51 = arith.addf %48, %50 : vector<2x128xf32>
    %c0_37 = arith.constant 0 : index
    %c0_38 = arith.constant 0 : index
    %c0_39 = arith.constant 0 : index
    %52 = vector.load %arg12[%c0_37, %c0_38, %c0_39] : memref<1x2x128xf32, #tpu.memory_space<vmem>>, vector<1x2x128xf32>
    %53 = vector.shape_cast %52 : vector<1x2x128xf32> to vector<2x128xf32>
    %54 = vector.shape_cast %51 : vector<2x128xf32> to vector<1x2x128xf32>
    tpu.vector_store %arg12[%c0_37, %c0_38, %c0_39], %54 {strides = array<i32>} : memref<1x2x128xf32, #tpu.memory_space<vmem>>, vector<1x2x128xf32>,
    return
  }
  func.func @transform_0(%arg0: i32) -> (i32, i32, i32) {
    %c0_i32 = arith.constant 0 : i32
    %c0_i32_0 = arith.constant 0 : i32
    %c0_i32_1 = arith.constant 0 : i32
    return %arg0, %c0_i32, %c0_i32_0 : i32, i32, i32
  }
  func.func @transform_1(%arg0: i32) -> (i32, i32, i32) {
    %c0_i32 = arith.constant 0 : i32
    %c0_i32_0 = arith.constant 0 : i32
    %c0_i32_1 = arith.constant 0 : i32
    return %arg0, %c0_i32, %c0_i32_0 : i32, i32, i32
  }
  func.func @transform_2(%arg0: i32) -> (i32, i32, i32, i32) {
    %c0_i32 = arith.constant 0 : i32
    %c0_i32_0 = arith.constant 0 : i32
    %c0_i32_1 = arith.constant 0 : i32
    %c0_i32_2 = arith.constant 0 : i32
    return %arg0, %c0_i32, %c0_i32_0, %c0_i32_1 : i32, i32, i32, i32
  }
  func.func @transform_3(%arg0: i32) -> (i32, i32) {
    %c0_i32 = arith.constant 0 : i32
    %c0_i32_0 = arith.constant 0 : i32
    %c0_i32_1 = arith.constant 0 : i32
    return %c0_i32, %c0_i32_0 : i32, i32
  }
  func.func @transform_4(%arg0: i32) -> (i32, i32) {
    %c0_i32 = arith.constant 0 : i32
    %c0_i32_0 = arith.constant 0 : i32
    %c0_i32_1 = arith.constant 0 : i32
    return %c0_i32, %c0_i32_0 : i32, i32
  }
  func.func @transform_5(%arg0: i32) -> (i32, i32) {
    %c0_i32 = arith.constant 0 : i32
    %c0_i32_0 = arith.constant 0 : i32
    %c0_i32_1 = arith.constant 0 : i32
    return %c0_i32, %c0_i32_0 : i32, i32
  }
  func.func @transform_6(%arg0: i32) -> (i32, i32) {
    %c0_i32 = arith.constant 0 : i32
    %c0_i32_0 = arith.constant 0 : i32
    %c0_i32_1 = arith.constant 0 : i32
    return %c0_i32, %c0_i32_0 : i32, i32
  }
  func.func @transform_7(%arg0: i32) -> (i32, i32) {
    %c0_i32 = arith.constant 0 : i32
    %c0_i32_0 = arith.constant 0 : i32
    %c0_i32_1 = arith.constant 0 : i32
    return %c0_i32, %c0_i32_0 : i32, i32
  }
  func.func @transform_8(%arg0: i32) -> (i32, i32) {
    %c0_i32 = arith.constant 0 : i32
    %c0_i32_0 = arith.constant 0 : i32
    %c0_i32_1 = arith.constant 0 : i32
    return %c0_i32, %c0_i32_0 : i32, i32
  }
  func.func @transform_9(%arg0: i32) -> (i32, i32) {
    %c0_i32 = arith.constant 0 : i32
    %c0_i32_0 = arith.constant 0 : i32
    %c0_i32_1 = arith.constant 0 : i32
    return %c0_i32, %c0_i32_0 : i32, i32
  }
  func.func @transform_10(%arg0: i32) -> (i32, i32) {
    %c0_i32 = arith.constant 0 : i32
    %c0_i32_0 = arith.constant 0 : i32
    %c0_i32_1 = arith.constant 0 : i32
    return %c0_i32, %c0_i32_0 : i32, i32
  }
  func.func @transform_11(%arg0: i32) -> (i32, i32, i32) {
    %c0_i32 = arith.constant 0 : i32
    %c0_i32_0 = arith.constant 0 : i32
    %c0_i32_1 = arith.constant 0 : i32
    return %arg0, %c0_i32, %c0_i32_0 : i32, i32, i32
  }
}

</mosaic_0001>

<llo_original>
// kernel: gcn_forward.1
$region0: #{gcn_forward.1}
  #allocation0 [shape = 'u32[]', space=smem, size = 0x4, offset = 0x4, fixed_abs, tag = 'smem constant byte address 0x4 - core index']
  #allocation1 [shape = 'u32[144,128]{1,0:T(1,128)}', space=vmem, size = 0x12000, scoped, tag = 'internal scratch']
  %s0 = inlined_call_operand.hbm [shape: bf16[4,16,128], index: 0, kind: input, shape index: {}]
  %s1 = inlined_call_operand.hbm [shape: bf16[4,16,16], index: 1, kind: input, shape index: {}]
  %s2 = inlined_call_operand.vmem [shape: f32[4,2,16,1], index: 2, kind: input, shape index: {}]
  %s3 = inlined_call_operand.vmem [shape: bf16[128,128], index: 3, kind: input, shape index: {}]
  %s4 = inlined_call_operand.vmem [shape: f32[1,128], index: 4, kind: input, shape index: {}]
  %s5 = inlined_call_operand.vmem [shape: bf16[128,128], index: 5, kind: input, shape index: {}]
  %s6 = inlined_call_operand.vmem [shape: f32[1,128], index: 6, kind: input, shape index: {}]
  %s7 = inlined_call_operand.hbm [shape: bf16[128,128], index: 7, kind: input, shape index: {}]
  %s8 = inlined_call_operand.vmem [shape: f32[1,128], index: 8, kind: input, shape index: {}]
  %s9 = inlined_call_operand.hbm [shape: bf16[128,128], index: 9, kind: input, shape index: {}]
  %s10 = inlined_call_operand.vmem [shape: f32[1,128], index: 10, kind: input, shape index: {}]
  %s11 = inlined_call_operand.hbm [shape: f32[4,2,128], index: 11, kind: output, shape index: {}]
  %s12 = sld [smem:[#allocation0]]
  $region93: #{gcn_forward.1} parent=0
    _
  %s14 = ssub.s32 1, %s12
  %s15 = scalar_select 0, %s14, %s12
  $region1: #{gcn_forward.1} parent=0
    #allocation2 [shape = 'u8[8192]{0}', space=vmem, size = 0x2000, scoped, tag = 'input window, operand 0']
    #allocation3 [shape = 's32[2]{0}', space=sflag, size = 0x8, scoped, tag = 'scoped memory for gcn_forward.1']
    #allocation4 [shape = 's32[2]{0}', space=sflag, size = 0x8, scoped, tag = 'scoped memory for gcn_forward.1']
    #allocation5 [shape = 'u8[8192]{0}', space=vmem, size = 0x2000, scoped, tag = 'input window, operand 1']
    #allocation6 [shape = 's32[2]{0}', space=sflag, size = 0x8, scoped, tag = 'scoped memory for gcn_forward.1']
    #allocation7 [shape = 'u8[32768]{0}', space=vmem, size = 0x8000, scoped, tag = 'input window, operand 7, single buffered']
    #allocation8 [shape = 'u8[32768]{0}', space=vmem, size = 0x8000, scoped, tag = 'input window, operand 9, single buffered']
    #allocation9 [shape = 's32[1]{0}', space=sflag, size = 0x4, scoped, tag = 'scoped memory for gcn_forward.1']
    #allocation10 [shape = 'u8[2048]{0}', space=vmem, size = 0x800, scoped, tag = 'output window, operand 0']
    %16 = vsyncpa [#allocation3], 0
    %s17 = scalar_lea.sflag [#allocation3], 1
    %18 = vsyncpa %s17, 0
    %19 = vsyncpa [#allocation6], 0
    %s20 = scalar_lea.sflag [#allocation6], 1
    %21 = vsyncpa %s20, 0
    %22 = vsyncpa [#allocation9], 0
    %23 = vsyncpa [#allocation4], 0
    %s24 = scalar_lea.sflag [#allocation4], 1
    %25 = vsyncpa %s24, 0
    loop: start=0, step=1, limit=6
    $region2: #{gcn_forward.1} parent=1 // loop_pre_header
      _
    $region3: #{gcn_forward.1} parent=1 // loop_header
      %s27 = sphi 0, %s31
      %p28 = scmp.ge.s32.totalorder %s27, 6
      %s37 = sphi 0, %s39
      %s40 = sphi 0, %s37
      %s41 = sphi 0, %s40
      %s57 = sphi 0, %s41
      %s63 = sphi 0, %s65
      %s66 = sphi 0, %s63
      %s67 = sphi 0, %s66
      %s83 = sphi 0, %s67
      %s89 = sphi 0, %s91
      %s92 = sphi 0, %s89
      %s93 = sphi 0, %s92
      %s109 = sphi 0, %s93
      %s113 = sphi 0, %s113
      %s115 = sphi 0, %s113
      %s116 = sphi 0, %s115
      %s130 = sphi 0, %s116
      %s134 = sphi 0, %s134
      %s136 = sphi 0, %s134
      %s137 = sphi 0, %s136
      %s151 = sphi 0, %s137
      %s155 = sphi 0, %s155
      %s157 = sphi 0, %s155
      %s158 = sphi 0, %s157
      %s172 = sphi 0, %s158
      %s176 = sphi 0, %s176
      %s178 = sphi 0, %s176
      %s179 = sphi 0, %s178
      %s193 = sphi 0, %s179
      %s197 = sphi 0, %s197
      %s199 = sphi 0, %s197
      %s200 = sphi 0, %s199
      %s214 = sphi 0, %s200
      %s218 = sphi 0, %s218
      %s220 = sphi 0, %s218
      %s221 = sphi 0, %s220
      %s235 = sphi 0, %s221
      %s239 = sphi 0, %s239
      %s241 = sphi 0, %s239
      %s242 = sphi 0, %s241
      %s256 = sphi 0, %s242
      %s260 = sphi 0, %s260
      %s262 = sphi 0, %s260
      %s263 = sphi 0, %s262
      %s277 = sphi 0, %s263
      %s283 = sphi 0, %s285
      %s286 = sphi 0, %s283
      %s287 = sphi 0, %s286
      %s303 = sphi 0, %s287
    $region4: #{gcn_forward.1} parent=1 // loop_header_branch
      %30 = sbr.rel (%p28) target = $region8
    $region5: #{gcn_forward.1} parent=1 // loop_body
      %s32 = ssub.s32 %s27, 1
      %s33 = ssub.s32 %s27, 2
      %s34 = sadd.s32 %s27, 1
      %s35 = ssub.s32 %s27, %s34
      %p36 = scmp.eq.s32.totalorder %s35, 0
      %s38 = sadd.s32 %s37, 1
      %s39 = scalar_select %p36, %s37, %s38
      %p42 = pneg %p36
      %p43 = scmp.eq.s32.totalorder %s27, 3
      %p44 = por %p42, %p43
      %p45 = scmp.ne.s32.totalorder %s37, %s40
      %p46 = scmp.eq.s32.totalorder %s27, 0
      %p47 = por %p45, %p46
      %p48 = scmp.ne.s32.totalorder %s37, %s40
      %p49 = scmp.eq.s32.totalorder %s32, 3
      %p50 = por %p48, %p49
      %p51 = scmp.ne.s32.totalorder %s40, %s41
      %p52 = scmp.eq.s32.totalorder %s32, 0
      %p53 = por %p51, %p52
      %p54 = scmp.ne.s32.totalorder %s40, %s41
      %p55 = scmp.eq.s32.totalorder %s33, 3
      %p56 = por %p54, %p55
      %p58 = scmp.ne.s32.totalorder %s41, %s57
      %p59 = scmp.eq.s32.totalorder %s33, 0
      %p60 = por %p58, %p59
      %s61 = ssub.s32 %s27, %s34
      %p62 = scmp.eq.s32.totalorder %s61, 0
      %s64 = sadd.s32 %s63, 1
      %s65 = scalar_select %p62, %s63, %s64
      %p68 = pneg %p62
      %p69 = scmp.eq.s32.totalorder %s27, 3
      %p70 = por %p68, %p69
      %p71 = scmp.ne.s32.totalorder %s63, %s66
      %p72 = scmp.eq.s32.totalorder %s27, 0
      %p73 = por %p71, %p72
      %p74 = scmp.ne.s32.totalorder %s63, %s66
      %p75 = scmp.eq.s32.totalorder %s32, 3
      %p76 = por %p74, %p75
      %p77 = scmp.ne.s32.totalorder %s66, %s67
      %p78 = scmp.eq.s32.totalorder %s32, 0
      %p79 = por %p77, %p78
      %p80 = scmp.ne.s32.totalorder %s66, %s67
      %p81 = scmp.eq.s32.totalorder %s33, 3
      %p82 = por %p80, %p81
      %p84 = scmp.ne.s32.totalorder %s67, %s83
      %p85 = scmp.eq.s32.totalorder %s33, 0
      %p86 = por %p84, %p85
      %s87 = ssub.s32 %s27, %s34
      %p88 = scmp.eq.s32.totalorder %s87, 0
      %s90 = sadd.s32 %s89, 1
      %s91 = scalar_select %p88, %s89, %s90
      %p94 = pneg %p88
      %p95 = scmp.eq.s32.totalorder %s27, 3
      %p96 = por %p94, %p95
      %p97 = scmp.ne.s32.totalorder %s89, %s92
      %p98 = scmp.eq.s32.totalorder %s27, 0
      %p99 = por %p97, %p98
      %p100 = scmp.ne.s32.totalorder %s89, %s92
      %p101 = scmp.eq.s32.totalorder %s32, 3
      %p102 = por %p100, %p101
      %p103 = scmp.ne.s32.totalorder %s92, %s93
      %p104 = scmp.eq.s32.totalorder %s32, 0
      %p105 = por %p103, %p104
      %p106 = scmp.ne.s32.totalorder %s92, %s93
      %p107 = scmp.eq.s32.totalorder %s33, 3
      %p108 = por %p106, %p107
      %p110 = scmp.ne.s32.totalorder %s93, %s109
      %p111 = scmp.eq.s32.totalorder %s33, 0
      %p112 = por %p110, %p111
      %s114 = sadd.s32 %s113, 1
      %p117 = scmp.eq.s32.totalorder %s27, 3
      %p118 = scmp.ne.s32.totalorder %s113, %s115
      %p119 = scmp.eq.s32.totalorder %s27, 0
      %p120 = por %p118, %p119
      %p121 = scmp.ne.s32.totalorder %s113, %s115
      %p122 = scmp.eq.s32.totalorder %s32, 3
      %p123 = por %p121, %p122
      %p124 = scmp.ne.s32.totalorder %s115, %s116
      %p125 = scmp.eq.s32.totalorder %s32, 0
      %p126 = por %p124, %p125
      %p127 = scmp.ne.s32.totalorder %s115, %s116
      %p128 = scmp.eq.s32.totalorder %s33, 3
      %p129 = por %p127, %p128
      %p131 = scmp.ne.s32.totalorder %s116, %s130
      %p132 = scmp.eq.s32.totalorder %s33, 0
      %p133 = por %p131, %p132
      %s135 = sadd.s32 %s134, 1
      %p138 = scmp.eq.s32.totalorder %s27, 3
      %p139 = scmp.ne.s32.totalorder %s134, %s136
      %p140 = scmp.eq.s32.totalorder %s27, 0
      %p141 = por %p139, %p140
      %p142 = scmp.ne.s32.totalorder %s134, %s136
      %p143 = scmp.eq.s32.totalorder %s32, 3
      %p144 = por %p142, %p143
      %p145 = scmp.ne.s32.totalorder %s136, %s137
      %p146 = scmp.eq.s32.totalorder %s32, 0
      %p147 = por %p145, %p146
      %p148 = scmp.ne.s32.totalorder %s136, %s137
      %p149 = scmp.eq.s32.totalorder %s33, 3
      %p150 = por %p148, %p149
      %p152 = scmp.ne.s32.totalorder %s137, %s151
      %p153 = scmp.eq.s32.totalorder %s33, 0
      %p154 = por %p152, %p153
      %s156 = sadd.s32 %s155, 1
      %p159 = scmp.eq.s32.totalorder %s27, 3
      %p160 = scmp.ne.s32.totalorder %s155, %s157
      %p161 = scmp.eq.s32.totalorder %s27, 0
      %p162 = por %p160, %p161
      %p163 = scmp.ne.s32.totalorder %s155, %s157
      %p164 = scmp.eq.s32.totalorder %s32, 3
      %p165 = por %p163, %p164
      %p166 = scmp.ne.s32.totalorder %s157, %s158
      %p167 = scmp.eq.s32.totalorder %s32, 0
      %p168 = por %p166, %p167
      %p169 = scmp.ne.s32.totalorder %s157, %s158
      %p170 = scmp.eq.s32.totalorder %s33, 3
      %p171 = por %p169, %p170
      %p173 = scmp.ne.s32.totalorder %s158, %s172
      %p174 = scmp.eq.s32.totalorder %s33, 0
      %p175 = por %p173, %p174
      %s177 = sadd.s32 %s176, 1
      %p180 = scmp.eq.s32.totalorder %s27, 3
      %p181 = scmp.ne.s32.totalorder %s176, %s178
      %p182 = scmp.eq.s32.totalorder %s27, 0
      %p183 = por %p181, %p182
      %p184 = scmp.ne.s32.totalorder %s176, %s178
      %p185 = scmp.eq.s32.totalorder %s32, 3
      %p186 = por %p184, %p185
      %p187 = scmp.ne.s32.totalorder %s178, %s179
      %p188 = scmp.eq.s32.totalorder %s32, 0
      %p189 = por %p187, %p188
      %p190 = scmp.ne.s32.totalorder %s178, %s179
      %p191 = scmp.eq.s32.totalorder %s33, 3
      %p192 = por %p190, %p191
      %p194 = scmp.ne.s32.totalorder %s179, %s193
      %p195 = scmp.eq.s32.totalorder %s33, 0
      %p196 = por %p194, %p195
      %s198 = sadd.s32 %s197, 1
      %p201 = scmp.eq.s32.totalorder %s27, 3
      %p202 = scmp.ne.s32.totalorder %s197, %s199
      %p203 = scmp.eq.s32.totalorder %s27, 0
      %p204 = por %p202, %p203
      %p205 = scmp.ne.s32.totalorder %s197, %s199
      %p206 = scmp.eq.s32.totalorder %s32, 3
      %p207 = por %p205, %p206
      %p208 = scmp.ne.s32.totalorder %s199, %s200
      %p209 = scmp.eq.s32.totalorder %s32, 0
      %p210 = por %p208, %p209
      %p211 = scmp.ne.s32.totalorder %s199, %s200
      %p212 = scmp.eq.s32.totalorder %s33, 3
      %p213 = por %p211, %p212
      %p215 = scmp.ne.s32.totalorder %s200, %s214
      %p216 = scmp.eq.s32.totalorder %s33, 0
      %p217 = por %p215, %p216
      %s219 = sadd.s32 %s218, 1
      %p222 = scmp.eq.s32.totalorder %s27, 3
      %p223 = scmp.ne.s32.totalorder %s218, %s220
      %p224 = scmp.eq.s32.totalorder %s27, 0
      %p225 = por %p223, %p224
      %p226 = scmp.ne.s32.totalorder %s218, %s220
      %p227 = scmp.eq.s32.totalorder %s32, 3
      %p228 = por %p226, %p227
      %p229 = scmp.ne.s32.totalorder %s220, %s221
      %p230 = scmp.eq.s32.totalorder %s32, 0
      %p231 = por %p229, %p230
      %p232 = scmp.ne.s32.totalorder %s220, %s221
      %p233 = scmp.eq.s32.totalorder %s33, 3
      %p234 = por %p232, %p233
      %p236 = scmp.ne.s32.totalorder %s221, %s235
      %p237 = scmp.eq.s32.totalorder %s33, 0
      %p238 = por %p236, %p237
      %s240 = sadd.s32 %s239, 1
      %p243 = scmp.eq.s32.totalorder %s27, 3
      %p244 = scmp.ne.s32.totalorder %s239, %s241
      %p245 = scmp.eq.s32.totalorder %s27, 0
      %p246 = por %p244, %p245
      %p247 = scmp.ne.s32.totalorder %s239, %s241
      %p248 = scmp.eq.s32.totalorder %s32, 3
      %p249 = por %p247, %p248
      %p250 = scmp.ne.s32.totalorder %s241, %s242
      %p251 = scmp.eq.s32.totalorder %s32, 0
      %p252 = por %p250, %p251
      %p253 = scmp.ne.s32.totalorder %s241, %s242
      %p254 = scmp.eq.s32.totalorder %s33, 3
      %p255 = por %p253, %p254
      %p257 = scmp.ne.s32.totalorder %s242, %s256
      %p258 = scmp.eq.s32.totalorder %s33, 0
      %p259 = por %p257, %p258
      %s261 = sadd.s32 %s260, 1
      %p264 = scmp.eq.s32.totalorder %s27, 3
      %p265 = scmp.ne.s32.totalorder %s260, %s262
      %p266 = scmp.eq.s32.totalorder %s27, 0
      %p267 = por %p265, %p266
      %p268 = scmp.ne.s32.totalorder %s260, %s262
      %p269 = scmp.eq.s32.totalorder %s32, 3
      %p270 = por %p268, %p269
      %p271 = scmp.ne.s32.totalorder %s262, %s263
      %p272 = scmp.eq.s32.totalorder %s32, 0
      %p273 = por %p271, %p272
      %p274 = scmp.ne.s32.totalorder %s262, %s263
      %p275 = scmp.eq.s32.totalorder %s33, 3
      %p276 = por %p274, %p275
      %p278 = scmp.ne.s32.totalorder %s263, %s277
      %p279 = scmp.eq.s32.totalorder %s33, 0
      %p280 = por %p278, %p279
      %s281 = ssub.s32 %s27, %s34
      %p282 = scmp.eq.s32.totalorder %s281, 0
      %s284 = sadd.s32 %s283, 1
      %s285 = scalar_select %p282, %s283, %s284
      %p288 = pneg %p282
      %p289 = scmp.eq.s32.totalorder %s27, 3
      %p290 = por %p288, %p289
      %p291 = scmp.ne.s32.totalorder %s283, %s286
      %p292 = scmp.eq.s32.totalorder %s27, 0
      %p293 = por %p291, %p292
      %p294 = scmp.ne.s32.totalorder %s283, %s286
      %p295 = scmp.eq.s32.totalorder %s32, 3
      %p296 = por %p294, %p295
      %p297 = scmp.ne.s32.totalorder %s286, %s287
      %p298 = scmp.eq.s32.totalorder %s32, 0
      %p299 = por %p297, %p298
      %p300 = scmp.ne.s32.totalorder %s286, %s287
      %p301 = scmp.eq.s32.totalorder %s33, 3
      %p302 = por %p300, %p301
      %p304 = scmp.ne.s32.totalorder %s287, %s303
      %p305 = scmp.eq.s32.totalorder %s33, 0
      %p306 = por %p304, %p305
      %p307 = scmp.le.s32.totalorder 1, %s27
      %p308 = scmp.lt.s32.totalorder %s27, 5
      %p309 = pnand %p307, %p308
      %p310 = pneg %p309
      // Predicated region
      $region9: #{gcn_forward.1} parent=5 // pred_check
        _
      $region10: #{gcn_forward.1} parent=5 // pred_check_branch
        %312 = sbr.rel (%p309) target = $region12
      $region11: #{gcn_forward.1} parent=5 // pred_region
        %s313 = ssub.s32 %s27, 1
        // Predicated region
        $region13: #{gcn_forward.1} parent=11 // pred_check
          %p314 = pneg %p126
        $region14: #{gcn_forward.1} parent=11 // pred_check_branch
          %316 = sbr.rel (%p314) target = $region16
        $region15: #{gcn_forward.1} parent=11 // pred_region
          _
        $region16: #{gcn_forward.1} parent=11 // pred_fallthru
          _
        // Predicated region
        $region17: #{gcn_forward.1} parent=11 // pred_check
          %p317 = pneg %p147
        $region18: #{gcn_forward.1} parent=11 // pred_check_branch
          %319 = sbr.rel (%p317) target = $region20
        $region19: #{gcn_forward.1} parent=11 // pred_region
          _
        $region20: #{gcn_forward.1} parent=11 // pred_fallthru
          _
        // Predicated region
        $region21: #{gcn_forward.1} parent=11 // pred_check
          %p320 = pneg %p168
        $region22: #{gcn_forward.1} parent=11 // pred_check_branch
          %322 = sbr.rel (%p320) target = $region24
        $region23: #{gcn_forward.1} parent=11 // pred_region
          _
        $region24: #{gcn_forward.1} parent=11 // pred_fallthru
          _
        // Predicated region
        $region25: #{gcn_forward.1} parent=11 // pred_check
          %p323 = pneg %p189
        $region26: #{gcn_forward.1} parent=11 // pred_check_branch
          %325 = sbr.rel (%p323) target = $region28
        $region27: #{gcn_forward.1} parent=11 // pred_region
          _
        $region28: #{gcn_forward.1} parent=11 // pred_fallthru
          _
        // Predicated region
        $region29: #{gcn_forward.1} parent=11 // pred_check
          %p326 = pneg %p210
        $region30: #{gcn_forward.1} parent=11 // pred_check_branch
          %328 = sbr.rel (%p326) target = $region32
        $region31: #{gcn_forward.1} parent=11 // pred_region
          %s330 = ssub.s32 1024, 1024
          %331 = vsyncadd [#allocation6], %s330
          %s332 = sshll.u32 [#allocation7], 4
          %s333 = int_to_ptr.vmem [resolvable:$true] %s332
          %338 = dma.hbm_to_vmem [thread:$0]  %s7, 1024, %s333, [#allocation6], 64, 64, 4
        $region32: #{gcn_forward.1} parent=11 // pred_fallthru
          _
        // Predicated region
        $region33: #{gcn_forward.1} parent=11 // pred_check
          %p339 = pneg %p231
        $region34: #{gcn_forward.1} parent=11 // pred_check_branch
          %341 = sbr.rel (%p339) target = $region36
        $region35: #{gcn_forward.1} parent=11 // pred_region
          _
        $region36: #{gcn_forward.1} parent=11 // pred_fallthru
          _
        // Predicated region
        $region37: #{gcn_forward.1} parent=11 // pred_check
          %p342 = pneg %p252
        $region38: #{gcn_forward.1} parent=11 // pred_check_branch
          %344 = sbr.rel (%p342) target = $region40
        $region39: #{gcn_forward.1} parent=11 // pred_region
          %s346 = ssub.s32 1024, 1024
          %347 = vsyncadd [#allocation9], %s346
          %s348 = sshll.u32 [#allocation8], 4
          %s349 = int_to_ptr.vmem [resolvable:$true] %s348
          %354 = dma.hbm_to_vmem [thread:$0]  %s9, 1024, %s349, [#allocation9], 64, 64, 4
        $region40: #{gcn_forward.1} parent=11 // pred_fallthru
          _
        // Predicated region
        $region41: #{gcn_forward.1} parent=11 // pred_check
          %p355 = pneg %p273
        $region42: #{gcn_forward.1} parent=11 // pred_check_branch
          %357 = sbr.rel (%p355) target = $region44
        $region43: #{gcn_forward.1} parent=11 // pred_region
          _
        $region44: #{gcn_forward.1} parent=11 // pred_fallthru
          _
      $region12: #{gcn_forward.1} parent=5 // pred_fallthru
        _
      %p358 = scmp.lt.s32.totalorder %s27, 4
      // Predicated region
      $region45: #{gcn_forward.1} parent=5 // pred_check
        %p359 = pneg %p358
      $region46: #{gcn_forward.1} parent=5 // pred_check_branch
        %361 = sbr.rel (%p359) target = $region48
      $region47: #{gcn_forward.1} parent=5 // pred_region
        // Predicated region
        $region49: #{gcn_forward.1} parent=47 // pred_check
          %p362 = pneg %p47
        $region50: #{gcn_forward.1} parent=47 // pred_check_branch
          %364 = sbr.rel (%p362) target = $region52
        $region51: #{gcn_forward.1} parent=47 // pred_region
          %s365 = sand.u32 %s37, 1
          %s366 = scalar_lea.sflag [#allocation3], %s365
          %s367 = sand.u32 %s37, 1
          %s368 = smul.addr %s367, 8
          %s369 = scalar_lea.vmem [#allocation2], %s368
          %s371 = ssub.s32 128, 128
          %372 = vsyncadd %s366, %s371
          %s373 = smul.addr %s27, 2
          %s374 = smul.addr %s373, 64
          %s375 = scalar_lea.hbm %s0, %s374
          %s376 = sshll.u32 %s369, 4
          %s377 = int_to_ptr.vmem [resolvable:$true] %s376
          %382 = dma.hbm_to_vmem [thread:$0]  %s375, 128, %s377, %s366, 64, 64, 4
        $region52: #{gcn_forward.1} parent=47 // pred_fallthru
          _
        // Predicated region
        $region53: #{gcn_forward.1} parent=47 // pred_check
          %p383 = pneg %p73
        $region54: #{gcn_forward.1} parent=47 // pred_check_branch
          %385 = sbr.rel (%p383) target = $region56
        $region55: #{gcn_forward.1} parent=47 // pred_region
          %s386 = sand.u32 %s27, 1
          %s387 = scalar_lea.sflag [#allocation6], %s386
          %s388 = sand.u32 %s63, 1
          %s389 = smul.addr %s388, 8
          %s390 = scalar_lea.vmem [#allocation5], %s389
          %s392 = ssub.s32 128, 128
          %393 = vsyncadd %s387, %s392
          %s394 = smul.addr %s27, 2
          %s395 = smul.addr %s394, 64
          %s396 = scalar_lea.hbm %s1, %s395
          %s397 = sshll.u32 %s390, 4
          %s398 = int_to_ptr.vmem [resolvable:$true] %s397
          %403 = dma.hbm_to_vmem [thread:$0]  %s396, 128, %s398, %s387, 64, 64, 4
        $region56: #{gcn_forward.1} parent=47 // pred_fallthru
          _
        // Predicated region
        $region57: #{gcn_forward.1} parent=47 // pred_check
          %p404 = pneg %p99
        $region58: #{gcn_forward.1} parent=47 // pred_check_branch
          %406 = sbr.rel (%p404) target = $region60
        $region59: #{gcn_forward.1} parent=47 // pred_region
          %p407 = scmp.lt.s32.totalorder %s27, 3
          %s408 = scalar_select %p407, %s27, 3
          %s409 = smul.addr %s408, 4
          %s410 = smul.addr %s409, 8
          %s411 = scalar_lea.vmem %s2, %s410
        $region60: #{gcn_forward.1} parent=47 // pred_fallthru
          _
      $region48: #{gcn_forward.1} parent=5 // pred_fallthru
        _
      %p412 = scmp.le.s32.totalorder 1, %s27
      %p413 = scmp.lt.s32.totalorder %s27, 5
      %p414 = pnand %p412, %p413
      %p415 = pneg %p414
      // Predicated region
      $region61: #{gcn_forward.1} parent=5 // pred_check
        _
      $region62: #{gcn_forward.1} parent=5 // pred_check_branch
        %417 = sbr.rel (%p414) target = $region64
      $region63: #{gcn_forward.1} parent=5 // pred_region
        %s418 = ssub.s32 %s27, 1
        %s419 = sand.u32 %s40, 1
        %s420 = scalar_lea.sflag [#allocation3], %s419
        %s421 = sand.u32 %s40, 1
        %s422 = smul.addr %s421, 8
        %s423 = scalar_lea.vmem [#allocation2], %s422
        // Predicated region
        $region65: #{gcn_forward.1} parent=63 // pred_check
          %p424 = pneg %p53
        $region66: #{gcn_forward.1} parent=63 // pred_check_branch
          %426 = sbr.rel (%p424) target = $region68
        $region67: #{gcn_forward.1} parent=63 // pred_region
          %427 = dma.done %s420, 128
        $region68: #{gcn_forward.1} parent=63 // pred_fallthru
          _
        %s428 = sand.u32 %s32, 1
        %s429 = scalar_lea.sflag [#allocation6], %s428
        %s430 = sand.u32 %s66, 1
        %s431 = smul.addr %s430, 8
        %s432 = scalar_lea.vmem [#allocation5], %s431
        // Predicated region
        $region69: #{gcn_forward.1} parent=63 // pred_check
          %p433 = pneg %p79
        $region70: #{gcn_forward.1} parent=63 // pred_check_branch
          %435 = sbr.rel (%p433) target = $region72
        $region71: #{gcn_forward.1} parent=63 // pred_region
          %436 = dma.done %s429, 128
        $region72: #{gcn_forward.1} parent=63 // pred_fallthru
          _
        // Predicated region
        $region73: #{gcn_forward.1} parent=63 // pred_check
          %p437 = pneg %p210
        $region74: #{gcn_forward.1} parent=63 // pred_check_branch
          %439 = sbr.rel (%p437) target = $region76
        $region75: #{gcn_forward.1} parent=63 // pred_region
          %440 = dma.done [#allocation6], 1024
        $region76: #{gcn_forward.1} parent=63 // pred_fallthru
          _
        // Predicated region
        $region77: #{gcn_forward.1} parent=63 // pred_check
          %p441 = pneg %p252
        $region78: #{gcn_forward.1} parent=63 // pred_check_branch
          %443 = sbr.rel (%p441) target = $region80
        $region79: #{gcn_forward.1} parent=63 // pred_region
          %444 = dma.done [#allocation9], 1024
        $region80: #{gcn_forward.1} parent=63 // pred_fallthru
          _
        %s445 = sand.u32 %s40, 1
        %s446 = scalar_lea.sflag [#allocation3], %s445
        %s447 = sand.u32 %s40, 1
        %s448 = smul.addr %s447, 8
        %s449 = scalar_lea.vmem [#allocation2], %s448
        %p450 = pneg %p53
        %p451 = pneg %p50
        %s452 = sand.u32 %s32, 1
        %s453 = scalar_lea.sflag [#allocation6], %s452
        %s454 = sand.u32 %s66, 1
        %s455 = smul.addr %s454, 8
        %s456 = scalar_lea.vmem [#allocation5], %s455
        %p457 = pneg %p79
        %p458 = pneg %p76
        %p459 = scmp.lt.s32.totalorder %s32, 3
        %s460 = scalar_select %p459, %s32, 3
        %s461 = smul.addr %s460, 4
        %s462 = smul.addr %s461, 8
        %s463 = scalar_lea.vmem %s2, %s462
        %p464 = pneg %p105
        %p465 = pneg %p102
        %p466 = pneg %p126
        %p467 = pneg %p123
        %p468 = pneg %p147
        %p469 = pneg %p144
        %p470 = pneg %p168
        %p471 = pneg %p165
        %p472 = pneg %p189
        %p473 = pneg %p186
        %p474 = pneg %p210
        %p475 = pneg %p207
        %p476 = pneg %p231
        %p477 = pneg %p228
        %p478 = pneg %p252
        %p479 = pneg %p249
        %p480 = pneg %p273
        %p481 = pneg %p270
        %p482 = pneg %p299
        %p483 = pneg %p296
        %s484 = sand.u32 %s286, 1
        %s485 = scalar_lea.sflag [#allocation4], %s484
        %s486 = sand.u32 %s286, 1
        %s487 = smul.addr %s486, 2
        %s488 = scalar_lea.vmem [#allocation10], %s487
        %p489 = scmp.lt.s32.totalorder %s32, 3
        %s490 = scalar_select %p489, %s32, 3
        %s491 = smul.addr %s490, 4
        %s492 = smul.addr %s491, 8
        %s493 = scalar_lea.vmem %s2, %s492
        %v495 = vld [vmem:[%s423] sm:$0xf]
        %v496 = vld [vmem:[%s423 + $0x4] sm:$0xf]
        %v497 = vld [vmem:[%s432] sm:$0xf]
        %v498 = vld [vmem:[%s432 + $0x4] sm:$0xf]
        %v499 = vld [vmem:[#allocation7] sm:$0xf]
        %v500 = vld [vmem:[#allocation7 + $0x4] sm:$0xf]
        %v501 = vld [vmem:[#allocation7 + $0x8] sm:$0xf]
        %v502 = vld [vmem:[#allocation7 + $0xc] sm:$0xf]
        %v503 = vld [vmem:[#allocation7 + $0x10] sm:$0xf]
        %v504 = vld [vmem:[#allocation7 + $0x14] sm:$0xf]
        %v505 = vld [vmem:[#allocation7 + $0x18] sm:$0xf]
        %v506 = vld [vmem:[#allocation7 + $0x1c] sm:$0xf]
        %v507 = vld [vmem:[#allocation7 + $0x20] sm:$0xf]
        %v508 = vld [vmem:[#allocation7 + $0x24] sm:$0xf]
        %v509 = vld [vmem:[#allocation7 + $0x28] sm:$0xf]
        %v510 = vld [vmem:[#allocation7 + $0x2c] sm:$0xf]
        %v511 = vld [vmem:[#allocation7 + $0x30] sm:$0xf]
        %v512 = vld [vmem:[#allocation7 + $0x34] sm:$0xf]
        %v513 = vld [vmem:[#allocation7 + $0x38] sm:$0xf]
        %v514 = vld [vmem:[#allocation7 + $0x3c] sm:$0xf]
        %v515 = vld [vmem:[%s8] sm:$0x1]
        %v516 = vld [vmem:[%s3] sm:$0xf]
        %v517 = vld [vmem:[%s3 + $0x4] sm:$0xf]
        %v518 = vld [vmem:[%s3 + $0x8] sm:$0xf]
        %v519 = vld [vmem:[%s3 + $0xc] sm:$0xf]
        %v520 = vld [vmem:[%s3 + $0x10] sm:$0xf]
        %v521 = vld [vmem:[%s3 + $0x14] sm:$0xf]
        %v522 = vld [vmem:[%s3 + $0x18] sm:$0xf]
        %v523 = vld [vmem:[%s3 + $0x1c] sm:$0xf]
        %v524 = vld [vmem:[%s3 + $0x20] sm:$0xf]
        %v525 = vld [vmem:[%s3 + $0x24] sm:$0xf]
        %v526 = vld [vmem:[%s3 + $0x28] sm:$0xf]
        %v527 = vld [vmem:[%s3 + $0x2c] sm:$0xf]
        %v528 = vld [vmem:[%s3 + $0x30] sm:$0xf]
        %v529 = vld [vmem:[%s3 + $0x34] sm:$0xf]
        %v530 = vld [vmem:[%s3 + $0x38] sm:$0xf]
        %v531 = vld [vmem:[%s3 + $0x3c] sm:$0xf]
        %v534 = vunpack.c.l.b16 %v495
        %v535 = vunpack.c.l.b16 %v496
        %v536 = vpack.c.b16 %v535, %v534
        %v554 = vunpack.c.l.b16 %v516
        %v555 = vunpack.c.l.b16 %v517
        %v556 = vunpack.c.l.b16 %v518
        %v557 = vunpack.c.l.b16 %v519
        %v558 = vunpack.c.l.b16 %v520
        %v559 = vunpack.c.l.b16 %v521
        %v560 = vunpack.c.l.b16 %v522
        %v561 = vunpack.c.l.b16 %v523
        %v562 = vunpack.c.l.b16 %v524
        %v563 = vunpack.c.l.b16 %v525
        %v564 = vunpack.c.l.b16 %v526
        %v565 = vunpack.c.l.b16 %v527
        %v566 = vunpack.c.l.b16 %v528
        %v567 = vunpack.c.l.b16 %v529
        %v568 = vunpack.c.l.b16 %v530
        %v569 = vunpack.c.l.b16 %v531
        %v570 = vpack.c.b16 %v555, %v554
        %v571 = vpack.c.b16 %v557, %v556
        %v572 = vpack.c.b16 %v559, %v558
        %v573 = vpack.c.b16 %v561, %v560
        %v574 = vpack.c.b16 %v563, %v562
        %v575 = vpack.c.b16 %v565, %v564
        %v576 = vpack.c.b16 %v567, %v566
        %v577 = vpack.c.b16 %v569, %v568
        %586 = vmatprep.subr.bf16.mxu0 0
        %587 = vmatpush1.bf16.msra.mxu0 %v577
        %588 = vmatprep.subr.bf16.mxu0 0
        %589 = vmatpush1.bf16.msra.mxu0 %v576
        %590 = vmatprep.subr.bf16.mxu0 0
        %591 = vmatpush1.bf16.msra.mxu0 %v575
        %592 = vmatprep.subr.bf16.mxu0 0
        %593 = vmatpush1.bf16.msra.mxu0 %v574
        %594 = vmatprep.subr.bf16.mxu0 0
        %595 = vmatpush1.bf16.msra.mxu0 %v573
        %596 = vmatprep.subr.bf16.mxu0 0
        %597 = vmatpush1.bf16.msra.mxu0 %v572
        %598 = vmatprep.subr.bf16.mxu0 0
        %599 = vmatpush1.bf16.msra.mxu0 %v571
        %600 = vmatprep.subr.bf16.mxu0 0
        %601 = vmatpush1.bf16.msra.mxu0 %v570
        %602 = vmatprep.subr.bf16.mxu0 0
        %603 = vmatpush2.bf16.msra.mxu0 0
        %604 = vmatprep.subr.bf16.mxu0 0
        %605 = vmatpush2.bf16.msra.mxu0 0
        %606 = vmatprep.subr.bf16.mxu0 0
        %607 = vmatpush2.bf16.msra.mxu0 0
        %608 = vmatprep.subr.bf16.mxu0 0
        %609 = vmatpush2.bf16.msra.mxu0 0
        %610 = vmatprep.subr.bf16.mxu0 0
        %611 = vmatpush2.bf16.msra.mxu0 0
        %612 = vmatprep.subr.bf16.mxu0 0
        %613 = vmatpush2.bf16.msra.mxu0 0
        %614 = vmatprep.subr.bf16.mxu0 0
        %615 = vmatpush2.bf16.msra.mxu0 0
        %616 = vmatprep.subr.bf16.mxu0 0
        %617 = vmatpush2.bf16.msra.mxu0 0
        %618 = vmatprep.mubr.bf16.mxu0 0
        %619 = vmatmul.mubr.bf16.gmra.mxu0 %v536
        %v620 = vpop.f32.mrf.mxu0
        %v621 = vadd.f32 0.0, %v620
        %v622 = vpop.f32.mrf.mxu0
        %v623 = vpop.f32.mrf.mxu0
        %v624 = vadd.f32 0.0, %v623
        %v625 = vpop.f32.mrf.mxu0
        %626 = vdwg.mxu0
        %v627 = vld [vmem:[%s4] sm:$0x1]
        %v629 = vlaneseq
        %v630 = vshrl.u32 %v629, 7
        %v631 = vsub.s32 0, %v630
        %v632 = vrot.slane %v627, %v631
        %v636 = vunpack.c.l.b16 %v497
        %v637 = vunpack.c.l.b16 %v498
        %v638 = vpack.c.b16 %v637, %v636
        %vm639 = vcmask 130048
        %v641 = vsel %vm639, %v638, 0
        %643 = vmatprep.subr.mxu0 0.0
        %644 = vmatpush1.msra.mxu0 0.0
        %645 = vmatprep.subr.mxu0 0.0
        %646 = vmatpush1.msra.mxu0 0.0
        %647 = vmatprep.subr.mxu0 0.0
        %648 = vmatpush1.msra.mxu0 0.0
        %649 = vmatprep.subr.mxu0 0.0
        %650 = vmatpush1.msra.mxu0 0.0
        %651 = vmatprep.subr.mxu0 0.0
        %652 = vmatpush1.msra.mxu0 0.0
        %653 = vmatprep.subr.mxu0 0.0
        %654 = vmatpush1.msra.mxu0 0.0
        %655 = vmatprep.subr.mxu0 0.0
        %656 = vmatpush1.msra.mxu0 0.0
        %657 = vmatprep.subr.mxu0 0.0
        %658 = vmatpush1.msra.mxu0 0.0
        %659 = vmatprep.subr.mxu0 0.0
        %660 = vmatpush1.msra.mxu0 0.0
        %661 = vmatprep.subr.mxu0 0.0
        %662 = vmatpush1.msra.mxu0 0.0
        %663 = vmatprep.subr.mxu0 0.0
        %664 = vmatpush1.msra.mxu0 0.0
        %665 = vmatprep.subr.mxu0 0.0
        %666 = vmatpush1.msra.mxu0 0.0
        %667 = vmatprep.subr.mxu0 0.0
        %668 = vmatpush1.msra.mxu0 0.0
        %669 = vmatprep.subr.mxu0 0.0
        %670 = vmatpush1.msra.mxu0 0.0
        %671 = vmatprep.subr.mxu0 0.0
        %672 = vmatpush1.msra.mxu0 %v624
        %673 = vmatprep.subr.mxu0 0.0
        %674 = vmatpush1.msra.mxu0 %v621
        %675 = vmatprep.subr.mxu0 0.0
        %676 = vmatpush2.msra.mxu0 0.0
        %677 = vmatprep.subr.mxu0 0.0
        %678 = vmatpush2.msra.mxu0 0.0
        %679 = vmatprep.subr.mxu0 0.0
        %680 = vmatpush2.msra.mxu0 0.0
        %681 = vmatprep.subr.mxu0 0.0
        %682 = vmatpush2.msra.mxu0 0.0
        %683 = vmatprep.subr.mxu0 0.0
        %684 = vmatpush2.msra.mxu0 0.0
        %685 = vmatprep.subr.mxu0 0.0
        %686 = vmatpush2.msra.mxu0 0.0
        %687 = vmatprep.subr.mxu0 0.0
        %688 = vmatpush2.msra.mxu0 0.0
        %689 = vmatprep.subr.mxu0 0.0
        %690 = vmatpush2.msra.mxu0 0.0
        %691 = vmatprep.subr.mxu0 0.0
        %692 = vmatpush2.msra.mxu0 0.0
        %693 = vmatprep.subr.mxu0 0.0
        %694 = vmatpush2.msra.mxu0 0.0
        %695 = vmatprep.subr.mxu0 0.0
        %696 = vmatpush2.msra.mxu0 0.0
        %697 = vmatprep.subr.mxu0 0.0
        %698 = vmatpush2.msra.mxu0 0.0
        %699 = vmatprep.subr.mxu0 0.0
        %700 = vmatpush2.msra.mxu0 0.0
        %701 = vmatprep.subr.mxu0 0.0
        %702 = vmatpush2.msra.mxu0 0.0
        %703 = vmatprep.subr.mxu0 0.0
        %704 = vmatpush2.msra.mxu0 0.0
        %705 = vmatprep.subr.mxu0 0.0
        %706 = vmatpush2.msra.mxu0 0.0
        %707 = vmatprep.mubr.bf16.mxu0 0
        %708 = vmatmul.mubr.bf16.gmra.mxu0 %v641
        %v709 = vpop.f32.mrf.mxu0
        %v710 = vadd.f32 %v632, %v709
        %v711 = vpop.f32.mrf.mxu0
        %v712 = vpop.f32.mrf.mxu0
        %v713 = vadd.f32 %v632, %v712
        %v714 = vpop.f32.mrf.mxu0
        %715 = vdwg.mxu0
        %v716 = vmax.f32 %v710, 0.0
        %v717 = vmax.f32 %v713, 0.0
        %v718 = vpack.c.bf16 %v717, %v716
        %v720 = vlaneseq
        %v721 = vshrl.u32 %v720, 7
        %v722 = vsub.s32 0, %v721
        %v723 = vrot.slane %v515, %v722
        %v741 = vunpack.c.l.b16 %v499
        %v742 = vunpack.c.l.b16 %v500
        %v743 = vunpack.c.l.b16 %v501
        %v744 = vunpack.c.l.b16 %v502
        %v745 = vunpack.c.l.b16 %v503
        %v746 = vunpack.c.l.b16 %v504
        %v747 = vunpack.c.l.b16 %v505
        %v748 = vunpack.c.l.b16 %v506
        %v749 = vunpack.c.l.b16 %v507
        %v750 = vunpack.c.l.b16 %v508
        %v751 = vunpack.c.l.b16 %v509
        %v752 = vunpack.c.l.b16 %v510
        %v753 = vunpack.c.l.b16 %v511
        %v754 = vunpack.c.l.b16 %v512
        %v755 = vunpack.c.l.b16 %v513
        %v756 = vunpack.c.l.b16 %v514
        %v757 = vpack.c.b16 %v742, %v741
        %v758 = vpack.c.b16 %v744, %v743
        %v759 = vpack.c.b16 %v746, %v745
        %v760 = vpack.c.b16 %v748, %v747
        %v761 = vpack.c.b16 %v750, %v749
        %v762 = vpack.c.b16 %v752, %v751
        %v763 = vpack.c.b16 %v754, %v753
        %v764 = vpack.c.b16 %v756, %v755
        %773 = vmatprep.subr.bf16.mxu0 0
        %774 = vmatpush1.bf16.msra.mxu0 %v764
        %775 = vmatprep.subr.bf16.mxu0 0
        %776 = vmatpush1.bf16.msra.mxu0 %v763
        %777 = vmatprep.subr.bf16.mxu0 0
        %778 = vmatpush1.bf16.msra.mxu0 %v762
        %779 = vmatprep.subr.bf16.mxu0 0
        %780 = vmatpush1.bf16.msra.mxu0 %v761
        %781 = vmatprep.subr.bf16.mxu0 0
        %782 = vmatpush1.bf16.msra.mxu0 %v760
        %783 = vmatprep.subr.bf16.mxu0 0
        %784 = vmatpush1.bf16.msra.mxu0 %v759
        %785 = vmatprep.subr.bf16.mxu0 0
        %786 = vmatpush1.bf16.msra.mxu0 %v758
        %787 = vmatprep.subr.bf16.mxu0 0
        %788 = vmatpush1.bf16.msra.mxu0 %v757
        %789 = vmatprep.subr.bf16.mxu0 0
        %790 = vmatpush2.bf16.msra.mxu0 0
        %791 = vmatprep.subr.bf16.mxu0 0
        %792 = vmatpush2.bf16.msra.mxu0 0
        %793 = vmatprep.subr.bf16.mxu0 0
        %794 = vmatpush2.bf16.msra.mxu0 0
        %795 = vmatprep.subr.bf16.mxu0 0
        %796 = vmatpush2.bf16.msra.mxu0 0
        %797 = vmatprep.subr.bf16.mxu0 0
        %798 = vmatpush2.bf16.msra.mxu0 0
        %799 = vmatprep.subr.bf16.mxu0 0
        %800 = vmatpush2.bf16.msra.mxu0 0
        %801 = vmatprep.subr.bf16.mxu0 0
        %802 = vmatpush2.bf16.msra.mxu0 0
        %803 = vmatprep.subr.bf16.mxu0 0
        %804 = vmatpush2.bf16.msra.mxu0 0
        %805 = vmatprep.mubr.bf16.mxu0 0
        %806 = vmatmul.mubr.bf16.gmra.mxu0 %v718
        %v807 = vpop.f32.mrf.mxu0
        %v808 = vadd.f32 %v723, %v807
        %v809 = vpop.f32.mrf.mxu0
        %v810 = vpop.f32.mrf.mxu0
        %v811 = vadd.f32 %v723, %v810
        %v812 = vpop.f32.mrf.mxu0
        %813 = vdwg.mxu0
        %v814 = vmax.f32 %v808, 0.0
        %v815 = vmax.f32 %v811, 0.0
        %v816 = vpack.c.bf16 %v815, %v814
        %817 = vmatprep.subr.bf16.mxu0 0
        %818 = vmatpush1.bf16.msra.mxu0 %v764
        %819 = vmatprep.subr.bf16.mxu0 0
        %820 = vmatpush1.bf16.msra.mxu0 %v763
        %821 = vmatprep.subr.bf16.mxu0 0
        %822 = vmatpush1.bf16.msra.mxu0 %v762
        %823 = vmatprep.subr.bf16.mxu0 0
        %824 = vmatpush1.bf16.msra.mxu0 %v761
        %825 = vmatprep.subr.bf16.mxu0 0
        %826 = vmatpush1.bf16.msra.mxu0 %v760
        %827 = vmatprep.subr.bf16.mxu0 0
        %828 = vmatpush1.bf16.msra.mxu0 %v759
        %829 = vmatprep.subr.bf16.mxu0 0
        %830 = vmatpush1.bf16.msra.mxu0 %v758
        %831 = vmatprep.subr.bf16.mxu0 0
        %832 = vmatpush1.bf16.msra.mxu0 %v757
        %833 = vmatprep.subr.bf16.mxu0 0
        %834 = vmatpush2.bf16.msra.mxu0 0
        %835 = vmatprep.subr.bf16.mxu0 0
        %836 = vmatpush2.bf16.msra.mxu0 0
        %837 = vmatprep.subr.bf16.mxu0 0
        %838 = vmatpush2.bf16.msra.mxu0 0
        %839 = vmatprep.subr.bf16.mxu0 0
        %840 = vmatpush2.bf16.msra.mxu0 0
        %841 = vmatprep.subr.bf16.mxu0 0
        %842 = vmatpush2.bf16.msra.mxu0 0
        %843 = vmatprep.subr.bf16.mxu0 0
        %844 = vmatpush2.bf16.msra.mxu0 0
        %845 = vmatprep.subr.bf16.mxu0 0
        %846 = vmatpush2.bf16.msra.mxu0 0
        %847 = vmatprep.subr.bf16.mxu0 0
        %848 = vmatpush2.bf16.msra.mxu0 0
        %849 = vmatprep.mubr.bf16.mxu0 0
        %850 = vmatmul.mubr.bf16.gmra.mxu0 %v816
        %v851 = vpop.f32.mrf.mxu0
        %v852 = vadd.f32 %v723, %v851
        %v853 = vpop.f32.mrf.mxu0
        %v854 = vpop.f32.mrf.mxu0
        %v855 = vadd.f32 %v723, %v854
        %v856 = vpop.f32.mrf.mxu0
        %857 = vdwg.mxu0
        %v858 = vld [vmem:[%s5] sm:$0xf]
        %v859 = vld [vmem:[%s5 + $0x4] sm:$0xf]
        %v860 = vld [vmem:[%s5 + $0x8] sm:$0xf]
        %v861 = vld [vmem:[%s5 + $0xc] sm:$0xf]
        %v862 = vld [vmem:[%s5 + $0x10] sm:$0xf]
        %v863 = vld [vmem:[%s5 + $0x14] sm:$0xf]
        %v864 = vld [vmem:[%s5 + $0x18] sm:$0xf]
        %v865 = vld [vmem:[%s5 + $0x1c] sm:$0xf]
        %v866 = vld [vmem:[%s5 + $0x20] sm:$0xf]
        %v867 = vld [vmem:[%s5 + $0x24] sm:$0xf]
        %v868 = vld [vmem:[%s5 + $0x28] sm:$0xf]
        %v869 = vld [vmem:[%s5 + $0x2c] sm:$0xf]
        %v870 = vld [vmem:[%s5 + $0x30] sm:$0xf]
        %v871 = vld [vmem:[%s5 + $0x34] sm:$0xf]
        %v872 = vld [vmem:[%s5 + $0x38] sm:$0xf]
        %v873 = vld [vmem:[%s5 + $0x3c] sm:$0xf]
        %v874 = vpack.c.bf16 %v855, %v852
        %v891 = vunpack.c.l.b16 %v858
        %v892 = vunpack.c.l.b16 %v859
        %v893 = vunpack.c.l.b16 %v860
        %v894 = vunpack.c.l.b16 %v861
        %v895 = vunpack.c.l.b16 %v862
        %v896 = vunpack.c.l.b16 %v863
        %v897 = vunpack.c.l.b16 %v864
        %v898 = vunpack.c.l.b16 %v865
        %v899 = vunpack.c.l.b16 %v866
        %v900 = vunpack.c.l.b16 %v867
        %v901 = vunpack.c.l.b16 %v868
        %v902 = vunpack.c.l.b16 %v869
        %v903 = vunpack.c.l.b16 %v870
        %v904 = vunpack.c.l.b16 %v871
        %v905 = vunpack.c.l.b16 %v872
        %v906 = vunpack.c.l.b16 %v873
        %v907 = vpack.c.b16 %v892, %v891
        %v908 = vpack.c.b16 %v894, %v893
        %v909 = vpack.c.b16 %v896, %v895
        %v910 = vpack.c.b16 %v898, %v897
        %v911 = vpack.c.b16 %v900, %v899
        %v912 = vpack.c.b16 %v902, %v901
        %v913 = vpack.c.b16 %v904, %v903
        %v914 = vpack.c.b16 %v906, %v905
        %923 = vmatprep.subr.bf16.mxu0 0
        %924 = vmatpush1.bf16.msra.mxu0 %v914
        %925 = vmatprep.subr.bf16.mxu0 0
        %926 = vmatpush1.bf16.msra.mxu0 %v913
        %927 = vmatprep.subr.bf16.mxu0 0
        %928 = vmatpush1.bf16.msra.mxu0 %v912
        %929 = vmatprep.subr.bf16.mxu0 0
        %930 = vmatpush1.bf16.msra.mxu0 %v911
        %931 = vmatprep.subr.bf16.mxu0 0
        %932 = vmatpush1.bf16.msra.mxu0 %v910
        %933 = vmatprep.subr.bf16.mxu0 0
        %934 = vmatpush1.bf16.msra.mxu0 %v909
        %935 = vmatprep.subr.bf16.mxu0 0
        %936 = vmatpush1.bf16.msra.mxu0 %v908
        %937 = vmatprep.subr.bf16.mxu0 0
        %938 = vmatpush1.bf16.msra.mxu0 %v907
        %939 = vmatprep.subr.bf16.mxu0 0
        %940 = vmatpush2.bf16.msra.mxu0 0
        %941 = vmatprep.subr.bf16.mxu0 0
        %942 = vmatpush2.bf16.msra.mxu0 0
        %943 = vmatprep.subr.bf16.mxu0 0
        %944 = vmatpush2.bf16.msra.mxu0 0
        %945 = vmatprep.subr.bf16.mxu0 0
        %946 = vmatpush2.bf16.msra.mxu0 0
        %947 = vmatprep.subr.bf16.mxu0 0
        %948 = vmatpush2.bf16.msra.mxu0 0
        %949 = vmatprep.subr.bf16.mxu0 0
        %950 = vmatpush2.bf16.msra.mxu0 0
        %951 = vmatprep.subr.bf16.mxu0 0
        %952 = vmatpush2.bf16.msra.mxu0 0
        %953 = vmatprep.subr.bf16.mxu0 0
        %954 = vmatpush2.bf16.msra.mxu0 0
        %955 = vmatprep.mubr.bf16.mxu0 0
        %956 = vmatmul.mubr.bf16.gmra.mxu0 %v874
        %v957 = vpop.f32.mrf.mxu0
        %v958 = vadd.f32 0.0, %v957
        %v959 = vpop.f32.mrf.mxu0
        %v960 = vpop.f32.mrf.mxu0
        %v961 = vadd.f32 0.0, %v960
        %v962 = vpop.f32.mrf.mxu0
        %963 = vdwg.mxu0
        %v964 = vld [vmem:[%s6] sm:$0x1]
        %v966 = vlaneseq
        %v967 = vshrl.u32 %v966, 7
        %v968 = vsub.s32 0, %v967
        %v969 = vrot.slane %v964, %v968
        %971 = vmatprep.subr.mxu0 0.0
        %972 = vmatpush1.msra.mxu0 0.0
        %973 = vmatprep.subr.mxu0 0.0
        %974 = vmatpush1.msra.mxu0 0.0
        %975 = vmatprep.subr.mxu0 0.0
        %976 = vmatpush1.msra.mxu0 0.0
        %977 = vmatprep.subr.mxu0 0.0
        %978 = vmatpush1.msra.mxu0 0.0
        %979 = vmatprep.subr.mxu0 0.0
        %980 = vmatpush1.msra.mxu0 0.0
        %981 = vmatprep.subr.mxu0 0.0
        %982 = vmatpush1.msra.mxu0 0.0
        %983 = vmatprep.subr.mxu0 0.0
        %984 = vmatpush1.msra.mxu0 0.0
        %985 = vmatprep.subr.mxu0 0.0
        %986 = vmatpush1.msra.mxu0 0.0
        %987 = vmatprep.subr.mxu0 0.0
        %988 = vmatpush1.msra.mxu0 0.0
        %989 = vmatprep.subr.mxu0 0.0
        %990 = vmatpush1.msra.mxu0 0.0
        %991 = vmatprep.subr.mxu0 0.0
        %992 = vmatpush1.msra.mxu0 0.0
        %993 = vmatprep.subr.mxu0 0.0
        %994 = vmatpush1.msra.mxu0 0.0
        %995 = vmatprep.subr.mxu0 0.0
        %996 = vmatpush1.msra.mxu0 0.0
        %997 = vmatprep.subr.mxu0 0.0
        %998 = vmatpush1.msra.mxu0 0.0
        %999 = vmatprep.subr.mxu0 0.0
        %1000 = vmatpush1.msra.mxu0 %v961
        %1001 = vmatprep.subr.mxu0 0.0
        %1002 = vmatpush1.msra.mxu0 %v958
        %1003 = vmatprep.subr.mxu0 0.0
        %1004 = vmatpush2.msra.mxu0 0.0
        %1005 = vmatprep.subr.mxu0 0.0
        %1006 = vmatpush2.msra.mxu0 0.0
        %1007 = vmatprep.subr.mxu0 0.0
        %1008 = vmatpush2.msra.mxu0 0.0
        %1009 = vmatprep.subr.mxu0 0.0
        %1010 = vmatpush2.msra.mxu0 0.0
        %1011 = vmatprep.subr.mxu0 0.0
        %1012 = vmatpush2.msra.mxu0 0.0
        %1013 = vmatprep.subr.mxu0 0.0
        %1014 = vmatpush2.msra.mxu0 0.0
        %1015 = vmatprep.subr.mxu0 0.0
        %1016 = vmatpush2.msra.mxu0 0.0
        %1017 = vmatprep.subr.mxu0 0.0
        %1018 = vmatpush2.msra.mxu0 0.0
        %1019 = vmatprep.subr.mxu0 0.0
        %1020 = vmatpush2.msra.mxu0 0.0
        %1021 = vmatprep.subr.mxu0 0.0
        %1022 = vmatpush2.msra.mxu0 0.0
        %1023 = vmatprep.subr.mxu0 0.0
        %1024 = vmatpush2.msra.mxu0 0.0
        %1025 = vmatprep.subr.mxu0 0.0
        %1026 = vmatpush2.msra.mxu0 0.0
        %1027 = vmatprep.subr.mxu0 0.0
        %1028 = vmatpush2.msra.mxu0 0.0
        %1029 = vmatprep.subr.mxu0 0.0
        %1030 = vmatpush2.msra.mxu0 0.0
        %1031 = vmatprep.subr.mxu0 0.0
        %1032 = vmatpush2.msra.mxu0 0.0
        %1033 = vmatprep.subr.mxu0 0.0
        %1034 = vmatpush2.msra.mxu0 0.0
        %1035 = vmatprep.mubr.bf16.mxu0 0
        %1036 = vmatmul.mubr.bf16.gmra.mxu0 %v641
        %v1037 = vpop.f32.mrf.mxu0
        %v1038 = vadd.f32 %v969, %v1037
        %v1039 = vpop.f32.mrf.mxu0
        %v1040 = vpop.f32.mrf.mxu0
        %v1041 = vadd.f32 %v969, %v1040
        %v1042 = vpop.f32.mrf.mxu0
        %1043 = vdwg.mxu0
        %v1044 = vmax.f32 %v1038, 0.0
        %v1045 = vmax.f32 %v1041, 0.0
        %v1046 = vld [vmem:[%s493] sm:$0xff]
        %v1047 = vld [vmem:[%s493 + $0x8] sm:$0xff]
        %v1048 = vld [vmem:[%s493 + $0x10] sm:$0xff]
        %v1049 = vld [vmem:[%s493 + $0x18] sm:$0xff]
        %1051 = vset.pattern.permute.xlu0 0
        %1052 = vperm.xlu0 %1051, %v1046
        %v1053 = vpop.permute.xlu0 %1052
        %1056 = vset.pattern.permute.xlu0 0
        %1057 = vperm.xlu0 %1056, %v1047
        %v1058 = vpop.permute.xlu0 %1057
        %1061 = vset.pattern.permute.xlu0 0
        %1062 = vperm.xlu0 %1061, %v1048
        %v1063 = vpop.permute.xlu0 %1062
        %1066 = vset.pattern.permute.xlu0 0
        %1067 = vperm.xlu0 %1066, %v1049
        %v1068 = vpop.permute.xlu0 %1067
        %v1070 = vadd.f32 %v1044, %v1053
        %v1071 = vadd.f32 %v1045, %v1058
        %v1072 = vadd.f32 %v1044, %v1063
        %v1073 = vadd.f32 %v1045, %v1068
        %v1074 = vmax.f32 %v1070, %v1071
        %v1075 = vrot.slane %v1074, 4
        %v1076 = vmax.f32 %v1074, %v1075
        %v1077 = vrot.slane %v1076, 2
        %v1078 = vmax.f32 %v1076, %v1077
        %v1079 = vrot.slane %v1078, 1
        %v1080 = vmax.f32 %v1078, %v1079
        %v1081 = vmax.f32 %v1072, %v1073
        %v1082 = vrot.slane %v1081, 4
        %v1083 = vmax.f32 %v1081, %v1082
        %v1084 = vrot.slane %v1083, 2
        %v1085 = vmax.f32 %v1083, %v1084
        %v1086 = vrot.slane %v1085, 1
        %v1087 = vmax.f32 %v1085, %v1086
        %v1088 = vpack.c.bf16 %v1080, %v1080
        %v1089 = vpack.c.bf16 %v1087, %v1087
        %v1092 = vunpack.c.l.b16 %v1088
        %v1093 = vunpack.c.l.b16 %v1089
        %vm1094 = vcmask 1041409
        %v1095 = vsel %vm1094, %v1093, %v1092
        %v1096 = vpack.c.b16 %v1095, %v1095
        %1098 = vmatprep.subr.bf16.mxu0 0
        %1099 = vmatpush1.bf16.msra.mxu0 %v764
        %1100 = vmatprep.subr.bf16.mxu0 0
        %1101 = vmatpush1.bf16.msra.mxu0 %v763
        %1102 = vmatprep.subr.bf16.mxu0 0
        %1103 = vmatpush1.bf16.msra.mxu0 %v762
        %1104 = vmatprep.subr.bf16.mxu0 0
        %1105 = vmatpush1.bf16.msra.mxu0 %v761
        %1106 = vmatprep.subr.bf16.mxu0 0
        %1107 = vmatpush1.bf16.msra.mxu0 %v760
        %1108 = vmatprep.subr.bf16.mxu0 0
        %1109 = vmatpush1.bf16.msra.mxu0 %v759
        %1110 = vmatprep.subr.bf16.mxu0 0
        %1111 = vmatpush1.bf16.msra.mxu0 %v758
        %1112 = vmatprep.subr.bf16.mxu0 0
        %1113 = vmatpush1.bf16.msra.mxu0 %v757
        %1114 = vmatprep.subr.bf16.mxu0 0
        %1115 = vmatpush2.bf16.msra.mxu0 0
        %1116 = vmatprep.subr.bf16.mxu0 0
        %1117 = vmatpush2.bf16.msra.mxu0 0
        %1118 = vmatprep.subr.bf16.mxu0 0
        %1119 = vmatpush2.bf16.msra.mxu0 0
        %1120 = vmatprep.subr.bf16.mxu0 0
        %1121 = vmatpush2.bf16.msra.mxu0 0
        %1122 = vmatprep.subr.bf16.mxu0 0
        %1123 = vmatpush2.bf16.msra.mxu0 0
        %1124 = vmatprep.subr.bf16.mxu0 0
        %1125 = vmatpush2.bf16.msra.mxu0 0
        %1126 = vmatprep.subr.bf16.mxu0 0
        %1127 = vmatpush2.bf16.msra.mxu0 0
        %1128 = vmatprep.subr.bf16.mxu0 0
        %1129 = vmatpush2.bf16.msra.mxu0 0
        %1130 = vmatprep.mubr.bf16.mxu0 0
        %1131 = vmatmul.mubr.bf16.gmra.mxu0 %v1096
        %v1132 = vpop.f32.mrf.mxu0
        %v1133 = vadd.f32 %v723, %v1132
        %v1134 = vpop.f32.mrf.mxu0
        %v1135 = vpop.f32.mrf.mxu0
        %v1136 = vpop.f32.mrf.mxu0
        %1137 = vdwg.mxu0
        %v1138 = vmax.f32 %v1133, 0.0
        %v1139 = vld [vmem:[#allocation8] sm:$0xf]
        %v1140 = vld [vmem:[#allocation8 + $0x4] sm:$0xf]
        %v1141 = vld [vmem:[#allocation8 + $0x8] sm:$0xf]
        %v1142 = vld [vmem:[#allocation8 + $0xc] sm:$0xf]
        %v1143 = vld [vmem:[#allocation8 + $0x10] sm:$0xf]
        %v1144 = vld [vmem:[#allocation8 + $0x14] sm:$0xf]
        %v1145 = vld [vmem:[#allocation8 + $0x18] sm:$0xf]
        %v1146 = vld [vmem:[#allocation8 + $0x1c] sm:$0xf]
        %v1147 = vld [vmem:[#allocation8 + $0x20] sm:$0xf]
        %v1148 = vld [vmem:[#allocation8 + $0x24] sm:$0xf]
        %v1149 = vld [vmem:[#allocation8 + $0x28] sm:$0xf]
        %v1150 = vld [vmem:[#allocation8 + $0x2c] sm:$0xf]
        %v1151 = vld [vmem:[#allocation8 + $0x30] sm:$0xf]
        %v1152 = vld [vmem:[#allocation8 + $0x34] sm:$0xf]
        %v1153 = vld [vmem:[#allocation8 + $0x38] sm:$0xf]
        %v1154 = vld [vmem:[#allocation8 + $0x3c] sm:$0xf]
        %v1155 = vpack.c.bf16 %v1138, %v1138
        %v1156 = vld [vmem:[%s10] sm:$0x1]
        %v1158 = vlaneseq
        %v1159 = vshrl.u32 %v1158, 7
        %v1160 = vsub.s32 0, %v1159
        %v1161 = vrot.slane %v1156, %v1160
        %v1179 = vunpack.c.l.b16 %v1139
        %v1180 = vunpack.c.l.b16 %v1140
        %v1181 = vunpack.c.l.b16 %v1141
        %v1182 = vunpack.c.l.b16 %v1142
        %v1183 = vunpack.c.l.b16 %v1143
        %v1184 = vunpack.c.l.b16 %v1144
        %v1185 = vunpack.c.l.b16 %v1145
        %v1186 = vunpack.c.l.b16 %v1146
        %v1187 = vunpack.c.l.b16 %v1147
        %v1188 = vunpack.c.l.b16 %v1148
        %v1189 = vunpack.c.l.b16 %v1149
        %v1190 = vunpack.c.l.b16 %v1150
        %v1191 = vunpack.c.l.b16 %v1151
        %v1192 = vunpack.c.l.b16 %v1152
        %v1193 = vunpack.c.l.b16 %v1153
        %v1194 = vunpack.c.l.b16 %v1154
        %v1195 = vpack.c.b16 %v1180, %v1179
        %v1196 = vpack.c.b16 %v1182, %v1181
        %v1197 = vpack.c.b16 %v1184, %v1183
        %v1198 = vpack.c.b16 %v1186, %v1185
        %v1199 = vpack.c.b16 %v1188, %v1187
        %v1200 = vpack.c.b16 %v1190, %v1189
        %v1201 = vpack.c.b16 %v1192, %v1191
        %v1202 = vpack.c.b16 %v1194, %v1193
        %1211 = vmatprep.subr.bf16.mxu0 0
        %1212 = vmatpush1.bf16.msra.mxu0 %v1202
        %1213 = vmatprep.subr.bf16.mxu0 0
        %1214 = vmatpush1.bf16.msra.mxu0 %v1201
        %1215 = vmatprep.subr.bf16.mxu0 0
        %1216 = vmatpush1.bf16.msra.mxu0 %v1200
        %1217 = vmatprep.subr.bf16.mxu0 0
        %1218 = vmatpush1.bf16.msra.mxu0 %v1199
        %1219 = vmatprep.subr.bf16.mxu0 0
        %1220 = vmatpush1.bf16.msra.mxu0 %v1198
        %1221 = vmatprep.subr.bf16.mxu0 0
        %1222 = vmatpush1.bf16.msra.mxu0 %v1197
        %1223 = vmatprep.subr.bf16.mxu0 0
        %1224 = vmatpush1.bf16.msra.mxu0 %v1196
        %1225 = vmatprep.subr.bf16.mxu0 0
        %1226 = vmatpush1.bf16.msra.mxu0 %v1195
        %1227 = vmatprep.subr.bf16.mxu0 0
        %1228 = vmatpush2.bf16.msra.mxu0 0
        %1229 = vmatprep.subr.bf16.mxu0 0
        %1230 = vmatpush2.bf16.msra.mxu0 0
        %1231 = vmatprep.subr.bf16.mxu0 0
        %1232 = vmatpush2.bf16.msra.mxu0 0
        %1233 = vmatprep.subr.bf16.mxu0 0
        %1234 = vmatpush2.bf16.msra.mxu0 0
        %1235 = vmatprep.subr.bf16.mxu0 0
        %1236 = vmatpush2.bf16.msra.mxu0 0
        %1237 = vmatprep.subr.bf16.mxu0 0
        %1238 = vmatpush2.bf16.msra.mxu0 0
        %1239 = vmatprep.subr.bf16.mxu0 0
        %1240 = vmatpush2.bf16.msra.mxu0 0
        %1241 = vmatprep.subr.bf16.mxu0 0
        %1242 = vmatpush2.bf16.msra.mxu0 0
        %1243 = vmatprep.mubr.bf16.mxu0 0
        %1244 = vmatmul.mubr.bf16.gmra.mxu0 %v1155
        %v1245 = vpop.f32.mrf.mxu0
        %v1246 = vadd.f32 %v1161, %v1245
        %v1247 = vpop.f32.mrf.mxu0
        %v1248 = vpop.f32.mrf.mxu0
        %v1249 = vpop.f32.mrf.mxu0
        %1250 = vdwg.mxu0
        %1251 = vst [vmem:[%s488] sm:$0x3] %v1246
        %s1252 = sand.u32 %s286, 1
        %s1253 = scalar_lea.sflag [#allocation4], %s1252
        %s1254 = sand.u32 %s286, 1
        %s1255 = smul.addr %s1254, 2
        %s1256 = scalar_lea.vmem [#allocation10], %s1255
        // Predicated region
        $region81: #{gcn_forward.1} parent=63 // pred_check
          %p1257 = pneg %p296
        $region82: #{gcn_forward.1} parent=63 // pred_check_branch
          %1259 = sbr.rel (%p1257) target = $region84
        $region83: #{gcn_forward.1} parent=63 // pred_region
          %s1261 = ssub.s32 32, 32
          %1262 = vsyncadd %s1253, %s1261
          %s1263 = smul.addr %s32, 32
          %s1264 = scalar_lea.hbm %s11, %s1263
          %s1266 = sshll.u32 %s1256, 4
          %s1267 = int_to_ptr.vmem [resolvable:$true] %s1266
          %1269 = dma.vmem_to_hbm [thread:$0]  %s1267, 32, %s1264, %s1253
        $region84: #{gcn_forward.1} parent=63 // pred_fallthru
          _
      $region64: #{gcn_forward.1} parent=5 // pred_fallthru
        _
      %p1270 = scmp.le.s32.totalorder 2, %s27
      // Predicated region
      $region85: #{gcn_forward.1} parent=5 // pred_check
        %p1271 = pneg %p1270
      $region86: #{gcn_forward.1} parent=5 // pred_check_branch
        %1273 = sbr.rel (%p1271) target = $region88
      $region87: #{gcn_forward.1} parent=5 // pred_region
        %s1274 = ssub.s32 %s27, 2
        // Predicated region
        $region89: #{gcn_forward.1} parent=87 // pred_check
          %p1275 = pneg %p302
        $region90: #{gcn_forward.1} parent=87 // pred_check_branch
          %1277 = sbr.rel (%p1275) target = $region92
        $region91: #{gcn_forward.1} parent=87 // pred_region
          %s1278 = sand.u32 %s287, 1
          %s1279 = scalar_lea.sflag [#allocation4], %s1278
          %s1280 = sand.u32 %s287, 1
          %s1281 = smul.addr %s1280, 2
          %s1282 = scalar_lea.vmem [#allocation10], %s1281
          %1283 = dma.done %s1279, 32
        $region92: #{gcn_forward.1} parent=87 // pred_fallthru
          _
      $region88: #{gcn_forward.1} parent=5 // pred_fallthru
        _
    $region6: #{gcn_forward.1} parent=1 // loop_footer
      %s31 = sadd.s32 1, %s27
    $region7: #{gcn_forward.1} parent=1 // loop_footer_branch
      %26 = sbr.rel target = $region3
    $region8: #{gcn_forward.1} parent=1 // loop_exit
      _
    %1284 = vsyncpa [#allocation3], 1
    %s1285 = scalar_lea.sflag [#allocation3], 1
    %1286 = vsyncpa %s1285, 1
    %1287 = vsyncpa [#allocation6], 1
    %s1288 = scalar_lea.sflag [#allocation6], 1
    %1289 = vsyncpa %s1288, 1
    %1290 = vsyncpa [#allocation9], 1
    %1291 = vsyncpa [#allocation4], 1
    %s1292 = scalar_lea.sflag [#allocation4], 1
    %1293 = vsyncpa %s1292, 1

</llo_original>
